<compile_context>
chip_gen: v6e
topology: v6e:2x2x1
jax: 0.10.0
libtpu: 0.0.40
codegen_flags: <defaults>
</compile_context>

<pallas_src>
import functools

import jax
import jax.numpy as jnp
from jax import lax
from jax.experimental import pallas as pl
from jax.experimental.pallas import tpu as pltpu

EPS = 1e-5
LANE = 128
SUBLANE = 8


def _round_up(v, m):
    return (v + m - 1) // m * m


# ----------------------------------------------------------------------------------
# Kernel
# ----------------------------------------------------------------------------------
def residual_block_mlp_kernel(x_ref, p_ref, w_ref, o_ref, *, n_real):
    # x_ref: [N_pad, C_pad] f32   input (zero-padded rows/cols)
    # p_ref: [8, C_pad]     f32   rows: 0=g1 1=b1 2=c1 3=g2 4=b2 5=c2 (6,7 unused)
    # w_ref: [2, C_pad, C_pad] bf16  w_ref[0] = W1^T, w_ref[1] = W2^T  ([in, out])
    # o_ref: [N_pad, C_pad] f32   output
    x = x_ref[...]

    g1 = p_ref[0:1, :]
    b1 = p_ref[1:2, :]
    c1 = p_ref[2:3, :]
    g2 = p_ref[3:4, :]
    b2 = p_ref[4:5, :]
    c2 = p_ref[5:6, :]

    n_pad = x_ref.shape[0]
    inv_n = jnp.float32(1.0 / n_real)
    if n_pad != n_real:
        # Batch rows were padded: mask them out of the BN statistics.
        row_ids = lax.broadcasted_iota(jnp.int32, (n_pad, 1), 0)
        row_mask = (row_ids < n_real).astype(jnp.float32)
    else:
        row_mask = None  # static decision -> no masking ops emitted

    def batch_norm(h, g, b):
        # Two-pass statistics (biased variance), f32 throughout.
        hm = h if row_mask is None else h * row_mask
        mean = jnp.sum(hm, axis=0, keepdims=True) * inv_n
        d = h - mean
        dm = d if row_mask is None else d * row_mask
        var = jnp.sum(dm * dm, axis=0, keepdims=True) * inv_n
        return d * lax.rsqrt(var + EPS) * g + b

    # ---- in_norm -> ReLU -> in_linear ----
    h = batch_norm(x, g1, b1)
    h = jnp.maximum(h, 0.0)
    h = jnp.dot(h.astype(jnp.bfloat16), w_ref[0],
                preferred_element_type=jnp.float32) + c1

    # ---- out_norm -> ReLU -> out_linear ----
    h = batch_norm(h, g2, b2)
    h = jnp.maximum(h, 0.0)
    h = jnp.dot(h.astype(jnp.bfloat16), w_ref[1],
                preferred_element_type=jnp.float32) + c2

    # ---- residual add (re-read x_ref instead of keeping a live copy) ----
    o_ref[...] = (h + x_ref[...]).astype(o_ref.dtype)


# ----------------------------------------------------------------------------------
# One-time parameter packing (hoisted out of the forward path)
# ----------------------------------------------------------------------------------
def pack_params(params, channels):
    """Pad/pack parameters once; reuse the result for every forward call."""
    c = channels
    c_pad = _round_up(max(c, LANE), LANE)

    # Six per-feature vectors -> one [8, C_pad] f32 tile (single DMA).
    p = jnp.zeros((SUBLANE, c_pad), jnp.float32)
    p = p.at[0, :c].set(params["g1"].astype(jnp.float32))
    p = p.at[1, :c].set(params["b1"].astype(jnp.float32))
    p = p.at[2, :c].set(params["c1"].astype(jnp.float32))
    p = p.at[3, :c].set(params["g2"].astype(jnp.float32))
    p = p.at[4, :c].set(params["b2"].astype(jnp.float32))
    p = p.at[5, :c].set(params["c2"].astype(jnp.float32))

    # Both transposed weights -> one [2, C_pad, C_pad] bf16 slab (single, half-size DMA).
    w = jnp.zeros((2, c_pad, c_pad), jnp.bfloat16)
    w = w.at[0, :c, :c].set(params["w1"].astype(jnp.bfloat16))
    w = w.at[1, :c, :c].set(params["w2"].astype(jnp.bfloat16))

    return {"p": p, "w": w, "channels": c, "c_pad": c_pad}


# ----------------------------------------------------------------------------------
# Forward wrapper
# ----------------------------------------------------------------------------------
def residual_block_mlp(x, packed):
    """x: [N, C] float32.  packed: output of pack_params() (cached across calls)."""
    n, c = x.shape
    assert c == packed["channels"]
    c_pad = packed["c_pad"]
    n_pad = _round_up(max(n, SUBLANE), SUBLANE)

    # Only x is padded per call; zero pad columns stay exactly zero through
    # BN/ReLU/matmul because gamma/beta/bias and weight pad rows/cols are zero.
    x_pad = jnp.zeros((n_pad, c_pad), jnp.float32).at[:n, :c].set(x.astype(jnp.float32))

    # VMEM budget: x block + out block (alias is HBM-only, both VMEM buffers resident)
    # + bf16 weight slab + param slab + ~4 live f32 temporaries.
    act_bytes = 4 * n_pad * c_pad
    weight_bytes = 2 * c_pad * c_pad * 2
    param_bytes = 4 * SUBLANE * c_pad
    vmem_needed = 2 * act_bytes + weight_bytes + param_bytes + 4 * act_bytes
    assert vmem_needed <= (56 << 20), (
        "resident set too large for a single-block kernel on v7x (64 MiB VMEM); "
        "needs the batch-tiled grid (see TODO at top of file)"
    )
    vmem_limit = min(max(int(vmem_needed * 1.25), 4 << 20), 64 << 20)

    flops = 4 * n_pad * c_pad * c_pad  # two matmuls, 2 flops/MAC
    bytes_accessed = 2 * act_bytes + weight_bytes + param_bytes

    vmem = pl.BlockSpec(memory_space=pltpu.MemorySpace.VMEM)
    out = pl.pallas_call(
        functools.partial(residual_block_mlp_kernel, n_real=n),
        out_shape=jax.ShapeDtypeStruct((n_pad, c_pad), jnp.float32),
        in_specs=[vmem, vmem, vmem],
        out_specs=vmem,
        input_output_aliases={0: 0},  # reuse padded-x HBM buffer for the output
        compiler_params=pltpu.CompilerParams(vmem_limit_bytes=vmem_limit),
        cost_estimate=pl.CostEstimate(
            flops=flops, transcendentals=2 * c_pad, bytes_accessed=bytes_accessed
        ),
    )(x_pad, packed["p"], packed["w"])
    return out[:n, :c].astype(x.dtype)


# ----------------------------------------------------------------------------------
# Init + pure-JAX reference
# ----------------------------------------------------------------------------------
def init_params(key, in_channels, out_channels):
    """PyTorch-default-style init. Linear weights stored transposed as [in, out]."""
    assert in_channels == out_channels, "residual add requires in_channels == out_channels"
    k1, k2, k3, k4 = jax.random.split(key, 4)
    bound1 = 1.0 / (in_channels ** 0.5)
    bound2 = 1.0 / (out_channels ** 0.5)
    return {
        "g1": jnp.ones((in_channels,), jnp.float32),
        "b1": jnp.zeros((in_channels,), jnp.float32),
        "w1": jax.random.uniform(k1, (in_channels, out_channels), jnp.float32, -bound1, bound1),
        "c1": jax.random.uniform(k2, (out_channels,), jnp.float32, -bound1, bound1),
        "g2": jnp.ones((out_channels,), jnp.float32),
        "b2": jnp.zeros((out_channels,), jnp.float32),
        "w2": jax.random.uniform(k3, (out_channels, out_channels), jnp.float32, -bound2, bound2),
        "c2": jax.random.uniform(k4, (out_channels,), jnp.float32, -bound2, bound2),
    }


def residual_block_mlp_ref(x, params):
    """Pure-JAX f32 reference (matches PyTorch forward, training-mode BatchNorm1d)."""
    def bn(h, g, b):
        m = jnp.mean(h, axis=0, keepdims=True)
        v = jnp.mean((h - m) ** 2, axis=0, keepdims=True)
        return (h - m) / jnp.sqrt(v + EPS) * g + b

    in_x = x
    h = bn(x, params["g1"], params["b1"])
    h = jnp.maximum(h, 0.0)
    h = h @ params["w1"] + params["c1"]
    h = bn(h, params["g2"], params["b2"])
    h = jnp.maximum(h, 0.0)
    h = h @ params["w2"] + params["c2"]
    return h + in_x


if __name__ == "__main__":
    N, C = 8, 32  # small shapes: batch=8, in_channels=out_channels=32
    key = jax.random.PRNGKey(0)
    kx, kp = jax.random.split(key)
    x = jax.random.normal(kx, (N, C), jnp.float32)
    params = init_params(kp, C, C)

    packed = pack_params(params, C)          # one-time padding/packing (hoisted)
    out = residual_block_mlp(x, packed)
    out = jax.block_until_ready(out)

    ref = residual_block_mlp_ref(x, params)
    assert out.shape == (N, C) and out.dtype == jnp.float32
    # bf16 matmul operands -> ~1e-2-level error vs the f32 reference; tolerance loosened.
    assert jnp.allclose(out, ref, atol=5e-2, rtol=5e-2), "mismatch vs reference"
    print("KERNEL_OK")
</pallas_src>

<mosaic_0001>
module attributes {stable_mosaic.version = 11 : i64} {
  func.func @residual_block_mlp_kernel(%arg0: memref<8x128xf32, #tpu.memory_space<vmem>>, %arg1: memref<8x128xf32, #tpu.memory_space<vmem>>, %arg2: memref<2x128x128xbf16, #tpu.memory_space<vmem>>, %arg3: memref<8x128xf32, #tpu.memory_space<vmem>>) attributes {dimension_semantics = [], scalar_prefetch = 0 : i64, scratch_operands = 0 : i64, tpu.core_type = #tpu.core_type<tc>} {
    %c0 = arith.constant 0 : index
    %c0_0 = arith.constant 0 : index
    %0 = vector.load %arg0[%c0, %c0_0] : memref<8x128xf32, #tpu.memory_space<vmem>>, vector<8x128xf32>
    %c0_1 = arith.constant 0 : index
    %c0_2 = arith.constant 0 : index
    %1 = vector.load %arg1[%c0_1, %c0_2] : memref<8x128xf32, #tpu.memory_space<vmem>>, vector<1x128xf32>
    %c1 = arith.constant 1 : index
    %c0_3 = arith.constant 0 : index
    %2 = vector.load %arg1[%c1, %c0_3] : memref<8x128xf32, #tpu.memory_space<vmem>>, vector<1x128xf32>
    %c2 = arith.constant 2 : index
    %c0_4 = arith.constant 0 : index
    %3 = vector.load %arg1[%c2, %c0_4] : memref<8x128xf32, #tpu.memory_space<vmem>>, vector<1x128xf32>
    %c3 = arith.constant 3 : index
    %c0_5 = arith.constant 0 : index
    %4 = vector.load %arg1[%c3, %c0_5] : memref<8x128xf32, #tpu.memory_space<vmem>>, vector<1x128xf32>
    %c4 = arith.constant 4 : index
    %c0_6 = arith.constant 0 : index
    %5 = vector.load %arg1[%c4, %c0_6] : memref<8x128xf32, #tpu.memory_space<vmem>>, vector<1x128xf32>
    %c5 = arith.constant 5 : index
    %c0_7 = arith.constant 0 : index
    %6 = vector.load %arg1[%c5, %c0_7] : memref<8x128xf32, #tpu.memory_space<vmem>>, vector<1x128xf32>
    %cst = arith.constant dense<0.000000e+00> : vector<128xf32>
    %7 = vector.multi_reduction <add>, %0, %cst [0] : vector<8x128xf32> to vector<128xf32>
    %8 = vector.shape_cast %7 : vector<128xf32> to vector<1x128xf32>
    %cst_8 = arith.constant 1.250000e-01 : f32
    %9 = vector.broadcast %cst_8 : f32 to vector<1x128xf32>
    %10 = arith.mulf %8, %9 : vector<1x128xf32>
    %11 = vector.broadcast %10 : vector<1x128xf32> to vector<8x128xf32>
    %12 = arith.subf %0, %11 : vector<8x128xf32>
    %13 = arith.mulf %12, %12 : vector<8x128xf32>
    %cst_9 = arith.constant dense<0.000000e+00> : vector<128xf32>
    %14 = vector.multi_reduction <add>, %13, %cst_9 [0] : vector<8x128xf32> to vector<128xf32>
    %15 = vector.shape_cast %14 : vector<128xf32> to vector<1x128xf32>
    %cst_10 = arith.constant 1.250000e-01 : f32
    %16 = vector.broadcast %cst_10 : f32 to vector<1x128xf32>
    %17 = arith.mulf %15, %16 : vector<1x128xf32>
    %cst_11 = arith.constant 9.99999974E-6 : f32
    %18 = vector.broadcast %cst_11 : f32 to vector<1x128xf32>
    %19 = arith.addf %17, %18 : vector<1x128xf32>
    %20 = math.rsqrt %19 : vector<1x128xf32>
    %21 = vector.broadcast %20 : vector<1x128xf32> to vector<8x128xf32>
    %22 = arith.mulf %12, %21 : vector<8x128xf32>
    %23 = vector.broadcast %1 : vector<1x128xf32> to vector<8x128xf32>
    %24 = arith.mulf %22, %23 : vector<8x128xf32>
    %25 = vector.broadcast %2 : vector<1x128xf32> to vector<8x128xf32>
    %26 = arith.addf %24, %25 : vector<8x128xf32>
    %cst_12 = arith.constant 0.000000e+00 : f32
    %27 = vector.broadcast %cst_12 : f32 to vector<8x128xf32>
    %28 = arith.maximumf %26, %27 : vector<8x128xf32>
    %29 = arith.truncf %28 : vector<8x128xf32> to vector<8x128xbf16>
    %c0_13 = arith.constant 0 : index
    %c0_14 = arith.constant 0 : index
    %c0_15 = arith.constant 0 : index
    %30 = vector.load %arg2[%c0_13, %c0_14, %c0_15] : memref<2x128x128xbf16, #tpu.memory_space<vmem>>, vector<1x128x128xbf16>
    %31 = vector.shape_cast %30 : vector<1x128x128xbf16> to vector<128x128xbf16>
    %cst_16 = arith.constant dense<0.000000e+00> : vector<8x128xf32>
    %32 = tpu.matmul %29, %31, %cst_16 {dimension_numbers = #tpu.dot_dimension_numbers<[1], [0], [0], [1], [0, 0, 1, 1], [], []>} : vector<8x128xbf16>, vector<128x128xbf16>, vector<8x128xf32> -> vector<8x128xf32>
    %33 = vector.broadcast %3 : vector<1x128xf32> to vector<8x128xf32>
    %34 = arith.addf %32, %33 : vector<8x128xf32>
    %cst_17 = arith.constant dense<0.000000e+00> : vector<128xf32>
    %35 = vector.multi_reduction <add>, %34, %cst_17 [0] : vector<8x128xf32> to vector<128xf32>
    %36 = vector.shape_cast %35 : vector<128xf32> to vector<1x128xf32>
    %cst_18 = arith.constant 1.250000e-01 : f32
    %37 = vector.broadcast %cst_18 : f32 to vector<1x128xf32>
    %38 = arith.mulf %36, %37 : vector<1x128xf32>
    %39 = vector.broadcast %38 : vector<1x128xf32> to vector<8x128xf32>
    %40 = arith.subf %34, %39 : vector<8x128xf32>
    %41 = arith.mulf %40, %40 : vector<8x128xf32>
    %cst_19 = arith.constant dense<0.000000e+00> : vector<128xf32>
    %42 = vector.multi_reduction <add>, %41, %cst_19 [0] : vector<8x128xf32> to vector<128xf32>
    %43 = vector.shape_cast %42 : vector<128xf32> to vector<1x128xf32>
    %cst_20 = arith.constant 1.250000e-01 : f32
    %44 = vector.broadcast %cst_20 : f32 to vector<1x128xf32>
    %45 = arith.mulf %43, %44 : vector<1x128xf32>
    %cst_21 = arith.constant 9.99999974E-6 : f32
    %46 = vector.broadcast %cst_21 : f32 to vector<1x128xf32>
    %47 = arith.addf %45, %46 : vector<1x128xf32>
    %48 = math.rsqrt %47 : vector<1x128xf32>
    %49 = vector.broadcast %48 : vector<1x128xf32> to vector<8x128xf32>
    %50 = arith.mulf %40, %49 : vector<8x128xf32>
    %51 = vector.broadcast %4 : vector<1x128xf32> to vector<8x128xf32>
    %52 = arith.mulf %50, %51 : vector<8x128xf32>
    %53 = vector.broadcast %5 : vector<1x128xf32> to vector<8x128xf32>
    %54 = arith.addf %52, %53 : vector<8x128xf32>
    %cst_22 = arith.constant 0.000000e+00 : f32
    %55 = vector.broadcast %cst_22 : f32 to vector<8x128xf32>
    %56 = arith.maximumf %54, %55 : vector<8x128xf32>
    %57 = arith.truncf %56 : vector<8x128xf32> to vector<8x128xbf16>
    %c1_23 = arith.constant 1 : index
    %c0_24 = arith.constant 0 : index
    %c0_25 = arith.constant 0 : index
    %58 = vector.load %arg2[%c1_23, %c0_24, %c0_25] : memref<2x128x128xbf16, #tpu.memory_space<vmem>>, vector<1x128x128xbf16>
    %59 = vector.shape_cast %58 : vector<1x128x128xbf16> to vector<128x128xbf16>
    %cst_26 = arith.constant dense<0.000000e+00> : vector<8x128xf32>
    %60 = tpu.matmul %57, %59, %cst_26 {dimension_numbers = #tpu.dot_dimension_numbers<[1], [0], [0], [1], [0, 0, 1, 1], [], []>} : vector<8x128xbf16>, vector<128x128xbf16>, vector<8x128xf32> -> vector<8x128xf32>
    %61 = vector.broadcast %6 : vector<1x128xf32> to vector<8x128xf32>
    %62 = arith.addf %60, %61 : vector<8x128xf32>
    %c0_27 = arith.constant 0 : index
    %c0_28 = arith.constant 0 : index
    %63 = vector.load %arg0[%c0_27, %c0_28] : memref<8x128xf32, #tpu.memory_space<vmem>>, vector<8x128xf32>
    %64 = arith.addf %62, %63 : vector<8x128xf32>
    %c0_29 = arith.constant 0 : index
    %c0_30 = arith.constant 0 : index
    %65 = vector.load %arg3[%c0_29, %c0_30] : memref<8x128xf32, #tpu.memory_space<vmem>>, vector<8x128xf32>
    tpu.vector_store %arg3[%c0_29, %c0_30], %64 {strides = array<i32>} : memref<8x128xf32, #tpu.memory_space<vmem>>, vector<8x128xf32>,
    return
  }
}

</mosaic_0001>

<llo_original>
// kernel: tpu_custom_call.1
$region0: #{tpu_custom_call.1}
  #allocation0 [shape = 'u32[]', space=smem, size = 0x4, offset = 0x4, fixed_abs, tag = 'smem constant byte address 0x4 - core index']
  #allocation1 [shape = 'u32[144,128]{1,0:T(1,128)}', space=vmem, size = 0x12000, scoped, tag = 'internal scratch']
  %s0 = inlined_call_operand.hbm [shape: f32[8,128], index: 0, kind: input, shape index: {}, may-alias: {0,3}]
  %s1 = inlined_call_operand.vmem [shape: f32[8,128], index: 1, kind: input, shape index: {}]
  %s2 = inlined_call_operand.hbm [shape: bf16[2,128,128], index: 2, kind: input, shape index: {}]
  %s3 = inlined_call_operand.hbm [shape: f32[8,128], index: 3, kind: output, shape index: {}, may-alias: {0,3}]
  %s4 = sld [smem:[#allocation0]]
  $region30: #{tpu_custom_call.1} parent=0
    _
  %s6 = ssub.s32 1, %s4
  %s7 = scalar_select 0, %s6, %s4
  $region1: #{tpu_custom_call.1} parent=0
    #allocation2 [shape = 'u8[4096]{0}', space=vmem, size = 0x1000, scoped, tag = 'input window, operand 0, single buffered']
    #allocation3 [shape = 's32[1]{0}', space=sflag, size = 0x4, scoped, tag = 'scoped memory for tpu_custom_call.1']
    #allocation4 [shape = 's32[1]{0}', space=sflag, size = 0x4, scoped, tag = 'scoped memory for tpu_custom_call.1']
    #allocation5 [shape = 'u8[65536]{0}', space=vmem, size = 0x10000, scoped, tag = 'input window, operand 2, single buffered']
    #allocation6 [shape = 's32[1]{0}', space=sflag, size = 0x4, scoped, tag = 'scoped memory for tpu_custom_call.1']
    #allocation7 [shape = 'u8[4096]{0}', space=vmem, size = 0x1000, scoped, tag = 'output window, operand 0, single buffered']
    %8 = vsyncpa [#allocation3], 0
    %9 = vsyncpa [#allocation6], 0
    %10 = vsyncpa [#allocation4], 0
    // Predicated region
    $region2: #{tpu_custom_call.1} parent=1 // pred_check
      _
    $region3: #{tpu_custom_call.1} parent=1 // pred_check_branch
      %12 = sbr.rel (0) target = $region5
    $region4: #{tpu_custom_call.1} parent=1 // pred_region
      %s14 = ssub.s32 128, 128
      %15 = vsyncadd [#allocation3], %s14
      %s17 = sshll.u32 [#allocation2], 4
      %s18 = int_to_ptr.vmem [resolvable:$true] %s17
      %20 = dma.hbm_to_vmem [thread:$0]  %s0, 128, %s18, [#allocation3]
    $region5: #{tpu_custom_call.1} parent=1 // pred_fallthru
      _
    // Predicated region
    $region6: #{tpu_custom_call.1} parent=1 // pred_check
      _
    $region7: #{tpu_custom_call.1} parent=1 // pred_check_branch
      %22 = sbr.rel (0) target = $region9
    $region8: #{tpu_custom_call.1} parent=1 // pred_region
      _
    $region9: #{tpu_custom_call.1} parent=1 // pred_fallthru
      _
    // Predicated region
    $region10: #{tpu_custom_call.1} parent=1 // pred_check
      _
    $region11: #{tpu_custom_call.1} parent=1 // pred_check_branch
      %24 = sbr.rel (0) target = $region13
    $region12: #{tpu_custom_call.1} parent=1 // pred_region
      %s26 = ssub.s32 2048, 2048
      %27 = vsyncadd [#allocation6], %s26
      %s28 = sshll.u32 [#allocation5], 4
      %s29 = int_to_ptr.vmem [resolvable:$true] %s28
      %34 = dma.hbm_to_vmem [thread:$0]  %s2, 2048, %s29, [#allocation6], 64, 64, 4
    $region13: #{tpu_custom_call.1} parent=1 // pred_fallthru
      _
    // Predicated region
    $region14: #{tpu_custom_call.1} parent=1 // pred_check
      _
    $region15: #{tpu_custom_call.1} parent=1 // pred_check_branch
      %36 = sbr.rel (0) target = $region17
    $region16: #{tpu_custom_call.1} parent=1 // pred_region
      %37 = dma.done [#allocation3], 128
    $region17: #{tpu_custom_call.1} parent=1 // pred_fallthru
      _
    // Predicated region
    $region18: #{tpu_custom_call.1} parent=1 // pred_check
      _
    $region19: #{tpu_custom_call.1} parent=1 // pred_check_branch
      %39 = sbr.rel (0) target = $region21
    $region20: #{tpu_custom_call.1} parent=1 // pred_region
      %40 = dma.done [#allocation6], 2048
    $region21: #{tpu_custom_call.1} parent=1 // pred_fallthru
      _
    %v42 = vld [vmem:[#allocation2] sm:$0xff]
    %v43 = vld [vmem:[%s1] sm:$0x1]
    %v44 = vld [vmem:[%s1 + $0x1] sm:$0x1]
    %v45 = vld [vmem:[%s1 + $0x2] sm:$0x1]
    %v46 = vld [vmem:[%s1 + $0x3] sm:$0x1]
    %v47 = vld [vmem:[%s1 + $0x4] sm:$0x1]
    %v48 = vld [vmem:[%s1 + $0x5] sm:$0x1]
    %v49 = vrot.slane %v42, 4
    %v50 = vadd.f32 %v42, %v49
    %v51 = vrot.slane %v50, 2
    %v52 = vadd.f32 %v50, %v51
    %v53 = vrot.slane %v52, 1
    %v54 = vadd.f32 %v52, %v53
    %v55 = vmul.f32 %v54, 0.125
    %v56 = vsub.f32 %v42, %v55
    %v57 = vmul.f32 %v56, %v56
    %v58 = vrot.slane %v57, 4
    %v59 = vadd.f32 %v57, %v58
    %v60 = vrot.slane %v59, 2
    %v61 = vadd.f32 %v59, %v60
    %v62 = vrot.slane %v61, 1
    %v63 = vadd.f32 %v61, %v62
    %v64 = vmul.f32 %v63, 0.125
    %v65 = vadd.f32 %v64, 1e-05
    %v66 = vrsqrt.pop %v65
    %v67 = vmul.f32 %v56, %v66
    %v68 = vlaneseq
    %v69 = vshrl.u32 %v68, 7
    %v70 = vsub.s32 0, %v69
    %v71 = vrot.slane %v43, %v70
    %v72 = vmul.f32 %v67, %v71
    %v73 = vlaneseq
    %v74 = vshrl.u32 %v73, 7
    %v75 = vsub.s32 0, %v74
    %v76 = vrot.slane %v44, %v75
    %v77 = vadd.f32 %v72, %v76
    %v78 = vmax.f32 %v77, 0.0
    %v79 = vpack.c.bf16 %v78, %v78
    %v80 = vld [vmem:[#allocation5] sm:$0xf]
    %v81 = vld [vmem:[#allocation5 + $0x4] sm:$0xf]
    %v82 = vld [vmem:[#allocation5 + $0x8] sm:$0xf]
    %v83 = vld [vmem:[#allocation5 + $0xc] sm:$0xf]
    %v84 = vld [vmem:[#allocation5 + $0x10] sm:$0xf]
    %v85 = vld [vmem:[#allocation5 + $0x14] sm:$0xf]
    %v86 = vld [vmem:[#allocation5 + $0x18] sm:$0xf]
    %v87 = vld [vmem:[#allocation5 + $0x1c] sm:$0xf]
    %v88 = vld [vmem:[#allocation5 + $0x20] sm:$0xf]
    %v89 = vld [vmem:[#allocation5 + $0x24] sm:$0xf]
    %v90 = vld [vmem:[#allocation5 + $0x28] sm:$0xf]
    %v91 = vld [vmem:[#allocation5 + $0x2c] sm:$0xf]
    %v92 = vld [vmem:[#allocation5 + $0x30] sm:$0xf]
    %v93 = vld [vmem:[#allocation5 + $0x34] sm:$0xf]
    %v94 = vld [vmem:[#allocation5 + $0x38] sm:$0xf]
    %v95 = vld [vmem:[#allocation5 + $0x3c] sm:$0xf]
    %v96 = vlaneseq
    %v97 = vshrl.u32 %v96, 7
    %v98 = vsub.s32 0, %v97
    %v99 = vrot.slane %v45, %v98
    %v116 = vunpack.c.l.b16 %v80
    %v117 = vunpack.c.l.b16 %v81
    %v118 = vunpack.c.l.b16 %v82
    %v119 = vunpack.c.l.b16 %v83
    %v120 = vunpack.c.l.b16 %v84
    %v121 = vunpack.c.l.b16 %v85
    %v122 = vunpack.c.l.b16 %v86
    %v123 = vunpack.c.l.b16 %v87
    %v124 = vunpack.c.l.b16 %v88
    %v125 = vunpack.c.l.b16 %v89
    %v126 = vunpack.c.l.b16 %v90
    %v127 = vunpack.c.l.b16 %v91
    %v128 = vunpack.c.l.b16 %v92
    %v129 = vunpack.c.l.b16 %v93
    %v130 = vunpack.c.l.b16 %v94
    %v131 = vunpack.c.l.b16 %v95
    %v132 = vpack.c.b16 %v117, %v116
    %v133 = vpack.c.b16 %v119, %v118
    %v134 = vpack.c.b16 %v121, %v120
    %v135 = vpack.c.b16 %v123, %v122
    %v136 = vpack.c.b16 %v125, %v124
    %v137 = vpack.c.b16 %v127, %v126
    %v138 = vpack.c.b16 %v129, %v128
    %v139 = vpack.c.b16 %v131, %v130
    %148 = vmatprep.subr.bf16.mxu0 0
    %149 = vmatpush1.bf16.msra.mxu0 %v139
    %150 = vmatprep.subr.bf16.mxu0 0
    %151 = vmatpush1.bf16.msra.mxu0 %v138
    %152 = vmatprep.subr.bf16.mxu0 0
    %153 = vmatpush1.bf16.msra.mxu0 %v137
    %154 = vmatprep.subr.bf16.mxu0 0
    %155 = vmatpush1.bf16.msra.mxu0 %v136
    %156 = vmatprep.subr.bf16.mxu0 0
    %157 = vmatpush1.bf16.msra.mxu0 %v135
    %158 = vmatprep.subr.bf16.mxu0 0
    %159 = vmatpush1.bf16.msra.mxu0 %v134
    %160 = vmatprep.subr.bf16.mxu0 0
    %161 = vmatpush1.bf16.msra.mxu0 %v133
    %162 = vmatprep.subr.bf16.mxu0 0
    %163 = vmatpush1.bf16.msra.mxu0 %v132
    %164 = vmatprep.subr.bf16.mxu0 0
    %165 = vmatpush2.bf16.msra.mxu0 0
    %166 = vmatprep.subr.bf16.mxu0 0
    %167 = vmatpush2.bf16.msra.mxu0 0
    %168 = vmatprep.subr.bf16.mxu0 0
    %169 = vmatpush2.bf16.msra.mxu0 0
    %170 = vmatprep.subr.bf16.mxu0 0
    %171 = vmatpush2.bf16.msra.mxu0 0
    %172 = vmatprep.subr.bf16.mxu0 0
    %173 = vmatpush2.bf16.msra.mxu0 0
    %174 = vmatprep.subr.bf16.mxu0 0
    %175 = vmatpush2.bf16.msra.mxu0 0
    %176 = vmatprep.subr.bf16.mxu0 0
    %177 = vmatpush2.bf16.msra.mxu0 0
    %178 = vmatprep.subr.bf16.mxu0 0
    %179 = vmatpush2.bf16.msra.mxu0 0
    %180 = vmatprep.mubr.bf16.mxu0 0
    %181 = vmatmul.mubr.bf16.gmra.mxu0 %v79
    %v182 = vpop.f32.mrf.mxu0
    %v183 = vadd.f32 %v99, %v182
    %v184 = vpop.f32.mrf.mxu0
    %v185 = vpop.f32.mrf.mxu0
    %v186 = vpop.f32.mrf.mxu0
    %187 = vdwg.mxu0
    %v188 = vrot.slane %v183, 4
    %v189 = vadd.f32 %v183, %v188
    %v190 = vrot.slane %v189, 2
    %v191 = vadd.f32 %v189, %v190
    %v192 = vrot.slane %v191, 1
    %v193 = vadd.f32 %v191, %v192
    %v194 = vmul.f32 %v193, 0.125
    %v195 = vsub.f32 %v183, %v194
    %v196 = vmul.f32 %v195, %v195
    %v197 = vrot.slane %v196, 4
    %v198 = vadd.f32 %v196, %v197
    %v199 = vrot.slane %v198, 2
    %v200 = vadd.f32 %v198, %v199
    %v201 = vrot.slane %v200, 1
    %v202 = vadd.f32 %v200, %v201
    %v203 = vmul.f32 %v202, 0.125
    %v204 = vadd.f32 %v203, 1e-05
    %v205 = vrsqrt.pop %v204
    %v206 = vmul.f32 %v195, %v205
    %v207 = vlaneseq
    %v208 = vshrl.u32 %v207, 7
    %v209 = vsub.s32 0, %v208
    %v210 = vrot.slane %v46, %v209
    %v211 = vmul.f32 %v206, %v210
    %v212 = vlaneseq
    %v213 = vshrl.u32 %v212, 7
    %v214 = vsub.s32 0, %v213
    %v215 = vrot.slane %v47, %v214
    %v216 = vadd.f32 %v211, %v215
    %v217 = vmax.f32 %v216, 0.0
    %v218 = vpack.c.bf16 %v217, %v217
    %s219 = scalar_lea.vmem [#allocation5], 64
    %v220 = vld [vmem:[%s219] sm:$0xf]
    %v221 = vld [vmem:[%s219 + $0x4] sm:$0xf]
    %v222 = vld [vmem:[%s219 + $0x8] sm:$0xf]
    %v223 = vld [vmem:[%s219 + $0xc] sm:$0xf]
    %v224 = vld [vmem:[%s219 + $0x10] sm:$0xf]
    %v225 = vld [vmem:[%s219 + $0x14] sm:$0xf]
    %v226 = vld [vmem:[%s219 + $0x18] sm:$0xf]
    %v227 = vld [vmem:[%s219 + $0x1c] sm:$0xf]
    %v228 = vld [vmem:[%s219 + $0x20] sm:$0xf]
    %v229 = vld [vmem:[%s219 + $0x24] sm:$0xf]
    %v230 = vld [vmem:[%s219 + $0x28] sm:$0xf]
    %v231 = vld [vmem:[%s219 + $0x2c] sm:$0xf]
    %v232 = vld [vmem:[%s219 + $0x30] sm:$0xf]
    %v233 = vld [vmem:[%s219 + $0x34] sm:$0xf]
    %v234 = vld [vmem:[%s219 + $0x38] sm:$0xf]
    %v235 = vld [vmem:[%s219 + $0x3c] sm:$0xf]
    %v236 = vlaneseq
    %v237 = vshrl.u32 %v236, 7
    %v238 = vsub.s32 0, %v237
    %v239 = vrot.slane %v48, %v238
    %v256 = vunpack.c.l.b16 %v220
    %v257 = vunpack.c.l.b16 %v221
    %v258 = vunpack.c.l.b16 %v222
    %v259 = vunpack.c.l.b16 %v223
    %v260 = vunpack.c.l.b16 %v224
    %v261 = vunpack.c.l.b16 %v225
    %v262 = vunpack.c.l.b16 %v226
    %v263 = vunpack.c.l.b16 %v227
    %v264 = vunpack.c.l.b16 %v228
    %v265 = vunpack.c.l.b16 %v229
    %v266 = vunpack.c.l.b16 %v230
    %v267 = vunpack.c.l.b16 %v231
    %v268 = vunpack.c.l.b16 %v232
    %v269 = vunpack.c.l.b16 %v233
    %v270 = vunpack.c.l.b16 %v234
    %v271 = vunpack.c.l.b16 %v235
    %v272 = vpack.c.b16 %v257, %v256
    %v273 = vpack.c.b16 %v259, %v258
    %v274 = vpack.c.b16 %v261, %v260
    %v275 = vpack.c.b16 %v263, %v262
    %v276 = vpack.c.b16 %v265, %v264
    %v277 = vpack.c.b16 %v267, %v266
    %v278 = vpack.c.b16 %v269, %v268
    %v279 = vpack.c.b16 %v271, %v270
    %288 = vmatprep.subr.bf16.mxu0 0
    %289 = vmatpush1.bf16.msra.mxu0 %v279
    %290 = vmatprep.subr.bf16.mxu0 0
    %291 = vmatpush1.bf16.msra.mxu0 %v278
    %292 = vmatprep.subr.bf16.mxu0 0
    %293 = vmatpush1.bf16.msra.mxu0 %v277
    %294 = vmatprep.subr.bf16.mxu0 0
    %295 = vmatpush1.bf16.msra.mxu0 %v276
    %296 = vmatprep.subr.bf16.mxu0 0
    %297 = vmatpush1.bf16.msra.mxu0 %v275
    %298 = vmatprep.subr.bf16.mxu0 0
    %299 = vmatpush1.bf16.msra.mxu0 %v274
    %300 = vmatprep.subr.bf16.mxu0 0
    %301 = vmatpush1.bf16.msra.mxu0 %v273
    %302 = vmatprep.subr.bf16.mxu0 0
    %303 = vmatpush1.bf16.msra.mxu0 %v272
    %304 = vmatprep.subr.bf16.mxu0 0
    %305 = vmatpush2.bf16.msra.mxu0 0
    %306 = vmatprep.subr.bf16.mxu0 0
    %307 = vmatpush2.bf16.msra.mxu0 0
    %308 = vmatprep.subr.bf16.mxu0 0
    %309 = vmatpush2.bf16.msra.mxu0 0
    %310 = vmatprep.subr.bf16.mxu0 0
    %311 = vmatpush2.bf16.msra.mxu0 0
    %312 = vmatprep.subr.bf16.mxu0 0
    %313 = vmatpush2.bf16.msra.mxu0 0
    %314 = vmatprep.subr.bf16.mxu0 0
    %315 = vmatpush2.bf16.msra.mxu0 0
    %316 = vmatprep.subr.bf16.mxu0 0
    %317 = vmatpush2.bf16.msra.mxu0 0
    %318 = vmatprep.subr.bf16.mxu0 0
    %319 = vmatpush2.bf16.msra.mxu0 0
    %320 = vmatprep.mubr.bf16.mxu0 0
    %321 = vmatmul.mubr.bf16.gmra.mxu0 %v218
    %v322 = vpop.f32.mrf.mxu0
    %v323 = vadd.f32 %v239, %v322
    %v324 = vpop.f32.mrf.mxu0
    %v325 = vpop.f32.mrf.mxu0
    %v326 = vpop.f32.mrf.mxu0
    %327 = vdwg.mxu0
    %v328 = vadd.f32 %v323, %v42
    %329 = vst [vmem:[#allocation7] sm:$0xff] %v328
    // Predicated region
    $region22: #{tpu_custom_call.1} parent=1 // pred_check
      _
    $region23: #{tpu_custom_call.1} parent=1 // pred_check_branch
      %331 = sbr.rel (0) target = $region25
    $region24: #{tpu_custom_call.1} parent=1 // pred_region
      %s333 = ssub.s32 128, 128
      %334 = vsyncadd [#allocation4], %s333
      %s336 = sshll.u32 [#allocation7], 4
      %s337 = int_to_ptr.vmem [resolvable:$true] %s336
      %339 = dma.vmem_to_hbm [thread:$0]  %s337, 128, %s3, [#allocation4]
    $region25: #{tpu_custom_call.1} parent=1 // pred_fallthru
      _
    // Predicated region
    $region26: #{tpu_custom_call.1} parent=1 // pred_check
      _
    $region27: #{tpu_custom_call.1} parent=1 // pred_check_branch
      %341 = sbr.rel (0) target = $region29
    $region28: #{tpu_custom_call.1} parent=1 // pred_region
      %342 = dma.done [#allocation4], 128
    $region29: #{tpu_custom_call.1} parent=1 // pred_fallthru
      _
    %343 = vsyncpa [#allocation3], 1
    %344 = vsyncpa [#allocation6], 1
    %345 = vsyncpa [#allocation4], 1

</llo_original>
